<compile_context>
chip_gen: v6e
topology: v6e:2x2x1
jax: 0.10.0
libtpu: 0.0.40
codegen_flags: <defaults>
</compile_context>

<pallas_src>
import functools

import jax
import jax.numpy as jnp
from jax import lax
from jax.experimental import pallas as pl
from jax.experimental.pallas import tpu as pltpu

LANE = 128
_MASK_NEG = -1e9   # finite sentinel: fully-masked (padded) rows stay NaN-free


def _round_up(n, m):
    return ((n + m - 1) // m) * m


def _pad2d(a, rows, cols):
    out = jnp.zeros((rows, cols), a.dtype)
    return out.at[: a.shape[0], : a.shape[1]].set(a)


# ----------------------------------------------------------------------------
# Kernel 1: projection + fused per-head attention scalars (row tiled).
# ----------------------------------------------------------------------------
def _proj_kernel(x_ref, w_ref, ab_ref, h_ref, att_ref):
    # h = x @ W  (bf16 MXU operands, f32 accumulation)
    h = jnp.dot(x_ref[...], w_ref[...], preferred_element_type=jnp.float32)
    h_b = h.astype(jnp.bfloat16)
    # [a_src | a_dst] in one matmul against a block-diagonal projection matrix.
    att = jnp.dot(h_b, ab_ref[...], preferred_element_type=jnp.float32)
    h_ref[...] = h_b
    att_ref[...] = att


# ----------------------------------------------------------------------------
# Kernel 2: masked-softmax attention + aggregation.
# grid = (num_dst_tiles,) ["parallel"]; the head loop is unrolled in-body.
# ----------------------------------------------------------------------------
def _attn_kernel(adj_ref, att_ref, asrc_ref, h_ref, bias_ref, out_ref, acc_ref,
                 *, heads, out_dim, apply_elu):
    hdp = out_ref.shape[1]           # padded heads*out_dim (multiple of 128)

    # Hoisted out of the per-head path (done once per dst tile):
    mask_bias = jnp.where(adj_ref[...] != 0, 0.0, _MASK_NEG)   # (T, Ns) f32
    att_blk = att_ref[...]                                      # (T, ATTP) f32
    h_src = h_ref[...]                                          # (Ns, HDP) bf16
    col = lax.broadcasted_iota(jnp.int32, (1, hdp), 1)

    acc_ref[...] = jnp.zeros_like(acc_ref)

    # Statically-unrolled head loop (heads <= 8): no per-head grid-step
    # overhead, static lane/sublane slices for the per-head scalars, and the
    # scheduler can overlap head h+1's exp (EUP) with head h's matmul (MXU).
    for h in range(heads):
        a_dst = att_blk[:, heads + h:heads + h + 1]             # (T, 1)
        a_src = asrc_ref[h:h + 1, :]                            # (1, Ns)
        # e[i, j] = LeakyReLU(a_dst[i] + a_src[j]) + additive edge mask.
        e = a_dst + a_src
        e = jnp.where(e > 0, e, 0.2 * e) + mask_bias
        m = jnp.max(e, axis=1, keepdims=True)
        p = jnp.exp(e - m)                       # non-edges underflow to 0
        rowsum = jnp.maximum(jnp.sum(p, axis=1, keepdims=True), 1e-9)
        inv = pl.reciprocal(rowsum, approx=True)                # EUP slot
        # Deferred normalization: aggregate first (bf16 MXU, 128-lane output),
        # scale the (T, HDP) result, keep only this head's column slice.
        agg = jnp.dot(p.astype(jnp.bfloat16), h_src,
                      preferred_element_type=jnp.float32)       # (T, HDP)
        head_mask = (col >= h * out_dim) & (col < (h + 1) * out_dim)
        acc_ref[...] += jnp.where(head_mask, agg * inv, 0.0)

    o = acc_ref[...] + bias_ref[...]
    if apply_elu:
        # TODO(synk): use jnp.expm1 once confirmed in the Mosaic lowering set;
        # exp(o)-1 is mirrored exactly by the pure-JAX reference.
        o = jnp.where(o > 0, o, jnp.exp(o) - 1.0)
    out_ref[...] = o.astype(out_ref.dtype)


# ----------------------------------------------------------------------------
# Tile / VMEM sizing for kernel 2 (the larger of the two kernels).
# ----------------------------------------------------------------------------
def _choose_tile_and_vmem(np_, heads, hdp, attp, out_bytes):
    def need(t):
        return (2 * t * np_ * 1            # adj tile, int8, double-buffered
                + 2 * t * attp * 4         # att tile
                + 2 * heads * np_ * 4      # a_src_t (grid-invariant)
                + 2 * np_ * hdp * 2        # resident h, bf16
                + 2 * t * hdp * out_bytes  # out tile
                + t * hdp * 4              # f32 accumulator scratch
                + 2 * hdp * 4)             # bias
    budget = 24 * 1024 * 1024   # conservative: fits v7x's 32 MiB scoped default
    tile = 128
    for t in (512, 256, 128):
        # Require >=2 dst tiles so the parallel axis shards across v7x's 2 TCs.
        if np_ % t == 0 and np_ // t >= 2 and need(t) <= budget:
            tile = t
            break
    vmem_limit = int(min(max(2 * need(tile), 32 * 1024 * 1024),
                         64 * 1024 * 1024))
    return tile, vmem_limit


# ----------------------------------------------------------------------------
# One GATConv layer on padded dense inputs.
# ----------------------------------------------------------------------------
def gat_conv(x_p, adj_p, W, att_src, att_dst, bias, *, heads, out_dim,
             concat, apply_elu, out_dtype):
    """x_p: [Np, Fp] zero-padded features; adj_p: [Np, Np] int8 (dst, src) mask.

    Returns [Np, HDp] `out_dtype`; real data in [:N, :heads*out_dim].  Padded
    feature columns are exactly zero; padded dst ROWS carry bias/ELU(bias)
    values and must be masked or stripped by the caller.
    """
    if not concat:
        # graphwar GAT only uses concat=False on the last layer with heads=1.
        assert heads == 1, "concat=False with heads>1 not used by this model"
        # TODO(synk): head-averaging (concat=False, heads>1) not implemented.

    np_, fp = x_p.shape
    hd = heads * out_dim
    hdp = _round_up(hd, LANE)
    attp = _round_up(2 * heads, LANE)

    # Padded weights + fused block-diagonal attention projection [a_src|a_dst].
    w_p = _pad2d(W.astype(jnp.float32), fp, hdp).astype(jnp.bfloat16)
    ab = jnp.zeros((hdp, attp), jnp.float32)
    for h in range(heads):
        ab = ab.at[h * out_dim:(h + 1) * out_dim, h].set(att_src[h])
        ab = ab.at[h * out_dim:(h + 1) * out_dim, heads + h].set(att_dst[h])
    ab = ab.astype(jnp.bfloat16)
    bias_p = _pad2d(bias.reshape(1, -1).astype(jnp.float32), 1, hdp)

    out_bytes = 2 if out_dtype == jnp.bfloat16 else 4
    tile, vmem_limit = _choose_tile_and_vmem(np_, heads, hdp, attp, out_bytes)
    n_tiles = np_ // tile

    # ---- kernel 1: projection + attention scalars (row tiled, parallel) ----
    h_b, att = pl.pallas_call(
        _proj_kernel,
        grid=(n_tiles,),
        in_specs=[
            pl.BlockSpec((tile, fp), lambda i: (i, 0)),
            pl.BlockSpec((fp, hdp), lambda i: (0, 0)),
            pl.BlockSpec((hdp, attp), lambda i: (0, 0)),
        ],
        out_specs=[
            pl.BlockSpec((tile, hdp), lambda i: (i, 0)),
            pl.BlockSpec((tile, attp), lambda i: (i, 0)),
        ],
        out_shape=[
            jax.ShapeDtypeStruct((np_, hdp), jnp.bfloat16),
            jax.ShapeDtypeStruct((np_, attp), jnp.float32),
        ],
        compiler_params=pltpu.CompilerParams(
            dimension_semantics=("parallel",),
            vmem_limit_bytes=vmem_limit),
    )(x_p.astype(jnp.bfloat16), w_p, ab)

    # src attention scalars transposed to [heads, Np] (wrapper layout plumbing).
    a_src_t = jnp.transpose(att[:, :heads])

    # ---- kernel 2: attention softmax + aggregation (heads fused in-body) ----
    kernel = functools.partial(_attn_kernel, heads=heads, out_dim=out_dim,
                               apply_elu=apply_elu)
    out = pl.pallas_call(
        kernel,
        grid=(n_tiles,),
        in_specs=[
            pl.BlockSpec((tile, np_), lambda i: (i, 0)),    # adj (dst tile) i8
            pl.BlockSpec((tile, attp), lambda i: (i, 0)),   # att (dst tile)
            pl.BlockSpec((heads, np_), lambda i: (0, 0)),   # a_src_t (invariant)
            pl.BlockSpec((np_, hdp), lambda i: (0, 0)),     # h (all src, invar.)
            pl.BlockSpec((1, hdp), lambda i: (0, 0)),       # bias (invariant)
        ],
        out_specs=pl.BlockSpec((tile, hdp), lambda i: (i, 0)),
        out_shape=jax.ShapeDtypeStruct((np_, hdp), out_dtype),
        scratch_shapes=[pltpu.VMEM((tile, hdp), jnp.float32)],
        compiler_params=pltpu.CompilerParams(
            dimension_semantics=("parallel",),
            vmem_limit_bytes=vmem_limit),
    )(adj_p, att, a_src_t, h_b, bias_p)
    return out


def gat_forward(x, adj, params, *, hid, heads, out_channels):
    """GAT eval-mode forward: GATConv -> ELU -> [Dropout=id] -> GATConv."""
    n, f_in = x.shape
    np_ = _round_up(max(n, 1), 2 * LANE)   # multiple of 256 => >=2 dst tiles of 128
    fp = _round_up(f_in, LANE)
    x_p = _pad2d(x.astype(jnp.float32), np_, fp)
    # int8 adjacency: only ever compared against 0; halves the O(N^2) traffic.
    adj_p = (_pad2d(adj.astype(jnp.float32), np_, np_) > 0).astype(jnp.int8)

    # layer 1: GATConv(in, hid, heads, concat=True) -> ELU (fused), bf16 output
    h1 = gat_conv(x_p, adj_p, params["W1"], params["as1"], params["ad1"],
                  params["b1"], heads=heads, out_dim=hid, concat=True,
                  apply_elu=True, out_dtype=jnp.bfloat16)     # [Np, 128] bf16
    # Padded dst rows carry ELU(bias); zero them so the layer boundary is clean.
    row_ok = (jnp.arange(np_) < n)[:, None]
    h1 = jnp.where(row_ok, h1, jnp.zeros_like(h1))

    # layer 2: GATConv(hid*heads, out, heads=1, concat=False)
    out = gat_conv(h1, adj_p, params["W2"], params["as2"], params["ad2"],
                   params["b2"], heads=1, out_dim=out_channels, concat=False,
                   apply_elu=False, out_dtype=jnp.float32)    # [Np, 128] f32
    return out[:n, :out_channels]


# ----------------------------------------------------------------------------
# Pure-JAX reference mirroring the kernel numerics (bf16 MXU operands,
# f32 accumulation / softmax, exact division instead of approx reciprocal).
# ----------------------------------------------------------------------------
def _ref_layer(x, adj, W, att_src, att_dst, bias, heads, out_dim, concat, elu):
    f32, bf16 = jnp.float32, jnp.bfloat16
    n = x.shape[0]
    xb = x.astype(bf16).astype(f32)
    wb = W.astype(bf16).astype(f32)
    h = xb @ wb                                            # f32 accumulation
    hb = h.astype(bf16).astype(f32)
    h3 = hb.reshape(n, heads, out_dim)
    a_s = (h3 * att_src.astype(bf16).astype(f32)[None]).sum(-1)   # [n, H]
    a_d = (h3 * att_dst.astype(bf16).astype(f32)[None]).sum(-1)   # [n, H]
    e = a_d[:, None, :] + a_s[None, :, :]                  # [dst, src, H]
    e = jnp.where(e > 0, e, 0.2 * e)
    mask = adj[:, :, None] > 0
    e = jnp.where(mask, e, -1e9)
    m = e.max(axis=1, keepdims=True)
    p = jnp.where(mask, jnp.exp(e - m), 0.0)
    s = p.sum(axis=1)                                      # [dst, H]
    pb = p.astype(bf16).astype(f32)
    o = jnp.einsum("ijh,jhd->ihd", pb, h3)                 # [dst, H, D]
    o = o / s[:, :, None]
    o = o.reshape(n, heads * out_dim) if concat else o.mean(axis=1)
    o = o + bias
    return jnp.where(o > 0, o, jnp.exp(o) - 1.0) if elu else o


def gat_forward_ref(x, adj, params, *, hid, heads, out_channels):
    h1 = _ref_layer(x, adj, params["W1"], params["as1"], params["ad1"],
                    params["b1"], heads, hid, True, True)
    return _ref_layer(h1, adj, params["W2"], params["as2"], params["ad2"],
                      params["b2"], 1, out_channels, False, False)


if __name__ == "__main__":
    key = jax.random.PRNGKey(0)
    N, E = 16, 40
    in_channels, out_channels = 16, 4
    hid, heads = 8, 8

    keys = jax.random.split(key, 12)
    x = jax.random.normal(keys[0], (N, in_channels), dtype=jnp.float32)

    # Random directed edges (PyG convention: row 0 = src, row 1 = dst).
    src = jax.random.randint(keys[1], (E,), 0, N)
    dst = jax.random.randint(keys[2], (E,), 0, N)
    adj = jnp.zeros((N, N), dtype=jnp.float32).at[dst, src].set(1.0)
    adj = adj.at[jnp.arange(N), jnp.arange(N)].set(1.0)    # add self-loops

    def glorot(k, shape):
        fan = shape[0] + shape[-1]
        lim = jnp.sqrt(6.0 / fan)
        return jax.random.uniform(k, shape, jnp.float32, -lim, lim)

    params = {
        "W1": glorot(keys[3], (in_channels, heads * hid)),
        "as1": glorot(keys[4], (heads, hid)),
        "ad1": glorot(keys[5], (heads, hid)),
        "b1": jnp.zeros((heads * hid,), jnp.float32),
        "W2": glorot(keys[6], (heads * hid, out_channels)),
        "as2": glorot(keys[7], (1, out_channels)),
        "ad2": glorot(keys[8], (1, out_channels)),
        "b2": jnp.zeros((out_channels,), jnp.float32),
    }

    out = gat_forward(x, adj, params, hid=hid, heads=heads,
                      out_channels=out_channels)
    out = jax.block_until_ready(out)

    ref = gat_forward_ref(x, adj, params, hid=hid, heads=heads,
                          out_channels=out_channels)
    assert out.shape == (N, out_channels)
    assert bool(jnp.all(jnp.isfinite(out)))
    # Tolerance budget: approximate EUP reciprocal (softmax denominator) plus
    # f32-accumulation order differences; bf16 MXU casts are mirrored in ref.
    assert jnp.allclose(out, ref, atol=2e-2, rtol=2e-2)

    print("KERNEL_OK")
</pallas_src>

<mosaic_0001>
module attributes {stable_mosaic.version = 11 : i64} {
  func.func @_proj_kernel(%arg0: i32, %arg1: memref<128x128xbf16, #tpu.memory_space<vmem>>, %arg2: memref<128x128xbf16, #tpu.memory_space<vmem>>, %arg3: memref<128x128xbf16, #tpu.memory_space<vmem>>, %arg4: memref<128x128xbf16, #tpu.memory_space<vmem>>, %arg5: memref<128x128xf32, #tpu.memory_space<vmem>>) attributes {dimension_semantics = [#tpu.dimension_semantics<parallel>], iteration_bounds = array<i64: 2>, scalar_prefetch = 0 : i64, scratch_operands = 0 : i64, tpu.core_type = #tpu.core_type<tc>, window_params = [{transform_indices = @transform_0, window_bounds = array<i64: 128, 128>}, {pipeline_mode = #tpu.pipeline_mode<synchronous>, transform_indices = @transform_1, window_bounds = array<i64: 128, 128>}, {pipeline_mode = #tpu.pipeline_mode<synchronous>, transform_indices = @transform_2, window_bounds = array<i64: 128, 128>}, {transform_indices = @transform_3, window_bounds = array<i64: 128, 128>}, {transform_indices = @transform_4, window_bounds = array<i64: 128, 128>}]} {
    %c0 = arith.constant 0 : index
    %c0_0 = arith.constant 0 : index
    %0 = vector.load %arg1[%c0, %c0_0] : memref<128x128xbf16, #tpu.memory_space<vmem>>, vector<128x128xbf16>
    %c0_1 = arith.constant 0 : index
    %c0_2 = arith.constant 0 : index
    %1 = vector.load %arg2[%c0_1, %c0_2] : memref<128x128xbf16, #tpu.memory_space<vmem>>, vector<128x128xbf16>
    %cst = arith.constant dense<0.000000e+00> : vector<128x128xf32>
    %2 = tpu.matmul %0, %1, %cst {dimension_numbers = #tpu.dot_dimension_numbers<[1], [0], [0], [1], [0, 0, 1, 1], [], []>} : vector<128x128xbf16>, vector<128x128xbf16>, vector<128x128xf32> -> vector<128x128xf32>
    %3 = arith.truncf %2 : vector<128x128xf32> to vector<128x128xbf16>
    %c0_3 = arith.constant 0 : index
    %c0_4 = arith.constant 0 : index
    %4 = vector.load %arg3[%c0_3, %c0_4] : memref<128x128xbf16, #tpu.memory_space<vmem>>, vector<128x128xbf16>
    %cst_5 = arith.constant dense<0.000000e+00> : vector<128x128xf32>
    %5 = tpu.matmul %3, %4, %cst_5 {dimension_numbers = #tpu.dot_dimension_numbers<[1], [0], [0], [1], [0, 0, 1, 1], [], []>} : vector<128x128xbf16>, vector<128x128xbf16>, vector<128x128xf32> -> vector<128x128xf32>
    %c0_6 = arith.constant 0 : index
    %c0_7 = arith.constant 0 : index
    %6 = vector.load %arg4[%c0_6, %c0_7] : memref<128x128xbf16, #tpu.memory_space<vmem>>, vector<128x128xbf16>
    tpu.vector_store %arg4[%c0_6, %c0_7], %3 {strides = array<i32>} : memref<128x128xbf16, #tpu.memory_space<vmem>>, vector<128x128xbf16>,
    %c0_8 = arith.constant 0 : index
    %c0_9 = arith.constant 0 : index
    %7 = vector.load %arg5[%c0_8, %c0_9] : memref<128x128xf32, #tpu.memory_space<vmem>>, vector<128x128xf32>
    tpu.vector_store %arg5[%c0_8, %c0_9], %5 {strides = array<i32>} : memref<128x128xf32, #tpu.memory_space<vmem>>, vector<128x128xf32>,
    return
  }
  func.func @transform_0(%arg0: i32) -> (i32, i32) {
    %c0_i32 = arith.constant 0 : i32
    %c0_i32_0 = arith.constant 0 : i32
    return %arg0, %c0_i32 : i32, i32
  }
  func.func @transform_1(%arg0: i32) -> (i32, i32) {
    %c0_i32 = arith.constant 0 : i32
    %c0_i32_0 = arith.constant 0 : i32
    %c0_i32_1 = arith.constant 0 : i32
    return %c0_i32, %c0_i32_0 : i32, i32
  }
  func.func @transform_2(%arg0: i32) -> (i32, i32) {
    %c0_i32 = arith.constant 0 : i32
    %c0_i32_0 = arith.constant 0 : i32
    %c0_i32_1 = arith.constant 0 : i32
    return %c0_i32, %c0_i32_0 : i32, i32
  }
  func.func @transform_3(%arg0: i32) -> (i32, i32) {
    %c0_i32 = arith.constant 0 : i32
    %c0_i32_0 = arith.constant 0 : i32
    return %arg0, %c0_i32 : i32, i32
  }
  func.func @transform_4(%arg0: i32) -> (i32, i32) {
    %c0_i32 = arith.constant 0 : i32
    %c0_i32_0 = arith.constant 0 : i32
    return %arg0, %c0_i32 : i32, i32
  }
}

</mosaic_0001>

<llo_original>
// kernel: tpu_custom_call.1
$region0: #{tpu_custom_call.1}
  #allocation0 [shape = 'u32[]', space=smem, size = 0x4, offset = 0x4, fixed_abs, tag = 'smem constant byte address 0x4 - core index']
  #allocation1 [shape = 'u32[144,128]{1,0:T(1,128)}', space=vmem, size = 0x12000, scoped, tag = 'internal scratch']
  %s0 = inlined_call_operand.hbm [shape: bf16[256,128], index: 0, kind: input, shape index: {}]
  %s1 = inlined_call_operand.hbm [shape: bf16[128,128], index: 1, kind: input, shape index: {}]
  %s2 = inlined_call_operand.hbm [shape: bf16[128,128], index: 2, kind: input, shape index: {}]
  %s3 = inlined_call_operand.hbm [shape: bf16[256,128], index: 3, kind: output, shape index: {0}]
  %s4 = inlined_call_operand.hbm [shape: f32[256,128], index: 4, kind: output, shape index: {1}]
  %5 = xla_tuple %s3, %s4
  %s6 = sld [smem:[#allocation0]]
  $region65: #{tpu_custom_call.1} parent=0
    _
  %s8 = ssub.s32 1, %s6
  %s9 = scalar_select 0, %s8, %s6
  $region1: #{tpu_custom_call.1} parent=0
    #allocation2 [shape = 'u8[65536]{0}', space=vmem, size = 0x10000, scoped, tag = 'input window, operand 0']
    #allocation3 [shape = 's32[2]{0}', space=sflag, size = 0x8, scoped, tag = 'scoped memory for tpu_custom_call.1']
    #allocation4 [shape = 's32[2]{0}', space=sflag, size = 0x8, scoped, tag = 'scoped memory for tpu_custom_call.1']
    #allocation5 [shape = 'u8[32768]{0}', space=vmem, size = 0x8000, scoped, tag = 'input window, operand 1, single buffered']
    #allocation6 [shape = 's32[1]{0}', space=sflag, size = 0x4, scoped, tag = 'scoped memory for tpu_custom_call.1']
    #allocation7 [shape = 'u8[32768]{0}', space=vmem, size = 0x8000, scoped, tag = 'input window, operand 2, single buffered']
    #allocation8 [shape = 'u8[65536]{0}', space=vmem, size = 0x10000, scoped, tag = 'output window, operand 0']
    #allocation9 [shape = 'u8[131072]{0}', space=vmem, size = 0x20000, scoped, tag = 'output window, operand 1']
    #allocation10 [shape = 's32[2]{0}', space=sflag, size = 0x8, scoped, tag = 'scoped memory for tpu_custom_call.1']
    %10 = vsyncpa [#allocation3], 0
    %s11 = scalar_lea.sflag [#allocation3], 1
    %12 = vsyncpa %s11, 0
    %13 = vsyncpa [#allocation6], 0
    %14 = vsyncpa [#allocation4], 0
    %s15 = scalar_lea.sflag [#allocation4], 1
    %16 = vsyncpa %s15, 0
    %17 = vsyncpa [#allocation10], 0
    %s18 = scalar_lea.sflag [#allocation10], 1
    %19 = vsyncpa %s18, 0
    loop: start=0, step=1, limit=4
    $region2: #{tpu_custom_call.1} parent=1 // loop_pre_header
      _
    $region3: #{tpu_custom_call.1} parent=1 // loop_header
      %s21 = sphi 0, %s25
      %p22 = scmp.ge.s32.totalorder %s21, 4
      %s31 = sphi 0, %s33
      %s34 = sphi 0, %s31
      %s35 = sphi 0, %s34
      %s51 = sphi 0, %s35
      %s55 = sphi 0, %s55
      %s57 = sphi 0, %s55
      %s58 = sphi 0, %s57
      %s72 = sphi 0, %s58
      %s76 = sphi 0, %s76
      %s78 = sphi 0, %s76
      %s79 = sphi 0, %s78
      %s93 = sphi 0, %s79
      %s99 = sphi 0, %s101
      %s102 = sphi 0, %s99
      %s103 = sphi 0, %s102
      %s119 = sphi 0, %s103
      %s125 = sphi 0, %s127
      %s128 = sphi 0, %s125
      %s129 = sphi 0, %s128
      %s145 = sphi 0, %s129
    $region4: #{tpu_custom_call.1} parent=1 // loop_header_branch
      %24 = sbr.rel (%p22) target = $region8
    $region5: #{tpu_custom_call.1} parent=1 // loop_body
      %s26 = ssub.s32 %s21, 1
      %s27 = ssub.s32 %s21, 2
      %s28 = sadd.s32 %s21, 1
      %s29 = ssub.s32 %s21, %s28
      %p30 = scmp.eq.s32.totalorder %s29, 0
      %s32 = sadd.s32 %s31, 1
      %s33 = scalar_select %p30, %s31, %s32
      %p36 = pneg %p30
      %p37 = scmp.eq.s32.totalorder %s21, 1
      %p38 = por %p36, %p37
      %p39 = scmp.ne.s32.totalorder %s31, %s34
      %p40 = scmp.eq.s32.totalorder %s21, 0
      %p41 = por %p39, %p40
      %p42 = scmp.ne.s32.totalorder %s31, %s34
      %p43 = scmp.eq.s32.totalorder %s26, 1
      %p44 = por %p42, %p43
      %p45 = scmp.ne.s32.totalorder %s34, %s35
      %p46 = scmp.eq.s32.totalorder %s26, 0
      %p47 = por %p45, %p46
      %p48 = scmp.ne.s32.totalorder %s34, %s35
      %p49 = scmp.eq.s32.totalorder %s27, 1
      %p50 = por %p48, %p49
      %p52 = scmp.ne.s32.totalorder %s35, %s51
      %p53 = scmp.eq.s32.totalorder %s27, 0
      %p54 = por %p52, %p53
      %s56 = sadd.s32 %s55, 1
      %p59 = scmp.eq.s32.totalorder %s21, 1
      %p60 = scmp.ne.s32.totalorder %s55, %s57
      %p61 = scmp.eq.s32.totalorder %s21, 0
      %p62 = por %p60, %p61
      %p63 = scmp.ne.s32.totalorder %s55, %s57
      %p64 = scmp.eq.s32.totalorder %s26, 1
      %p65 = por %p63, %p64
      %p66 = scmp.ne.s32.totalorder %s57, %s58
      %p67 = scmp.eq.s32.totalorder %s26, 0
      %p68 = por %p66, %p67
      %p69 = scmp.ne.s32.totalorder %s57, %s58
      %p70 = scmp.eq.s32.totalorder %s27, 1
      %p71 = por %p69, %p70
      %p73 = scmp.ne.s32.totalorder %s58, %s72
      %p74 = scmp.eq.s32.totalorder %s27, 0
      %p75 = por %p73, %p74
      %s77 = sadd.s32 %s76, 1
      %p80 = scmp.eq.s32.totalorder %s21, 1
      %p81 = scmp.ne.s32.totalorder %s76, %s78
      %p82 = scmp.eq.s32.totalorder %s21, 0
      %p83 = por %p81, %p82
      %p84 = scmp.ne.s32.totalorder %s76, %s78
      %p85 = scmp.eq.s32.totalorder %s26, 1
      %p86 = por %p84, %p85
      %p87 = scmp.ne.s32.totalorder %s78, %s79
      %p88 = scmp.eq.s32.totalorder %s26, 0
      %p89 = por %p87, %p88
      %p90 = scmp.ne.s32.totalorder %s78, %s79
      %p91 = scmp.eq.s32.totalorder %s27, 1
      %p92 = por %p90, %p91
      %p94 = scmp.ne.s32.totalorder %s79, %s93
      %p95 = scmp.eq.s32.totalorder %s27, 0
      %p96 = por %p94, %p95
      %s97 = ssub.s32 %s21, %s28
      %p98 = scmp.eq.s32.totalorder %s97, 0
      %s100 = sadd.s32 %s99, 1
      %s101 = scalar_select %p98, %s99, %s100
      %p104 = pneg %p98
      %p105 = scmp.eq.s32.totalorder %s21, 1
      %p106 = por %p104, %p105
      %p107 = scmp.ne.s32.totalorder %s99, %s102
      %p108 = scmp.eq.s32.totalorder %s21, 0
      %p109 = por %p107, %p108
      %p110 = scmp.ne.s32.totalorder %s99, %s102
      %p111 = scmp.eq.s32.totalorder %s26, 1
      %p112 = por %p110, %p111
      %p113 = scmp.ne.s32.totalorder %s102, %s103
      %p114 = scmp.eq.s32.totalorder %s26, 0
      %p115 = por %p113, %p114
      %p116 = scmp.ne.s32.totalorder %s102, %s103
      %p117 = scmp.eq.s32.totalorder %s27, 1
      %p118 = por %p116, %p117
      %p120 = scmp.ne.s32.totalorder %s103, %s119
      %p121 = scmp.eq.s32.totalorder %s27, 0
      %p122 = por %p120, %p121
      %s123 = ssub.s32 %s21, %s28
      %p124 = scmp.eq.s32.totalorder %s123, 0
      %s126 = sadd.s32 %s125, 1
      %s127 = scalar_select %p124, %s125, %s126
      %p130 = pneg %p124
      %p131 = scmp.eq.s32.totalorder %s21, 1
      %p132 = por %p130, %p131
      %p133 = scmp.ne.s32.totalorder %s125, %s128
      %p134 = scmp.eq.s32.totalorder %s21, 0
      %p135 = por %p133, %p134
      %p136 = scmp.ne.s32.totalorder %s125, %s128
      %p137 = scmp.eq.s32.totalorder %s26, 1
      %p138 = por %p136, %p137
      %p139 = scmp.ne.s32.totalorder %s128, %s129
      %p140 = scmp.eq.s32.totalorder %s26, 0
      %p141 = por %p139, %p140
      %p142 = scmp.ne.s32.totalorder %s128, %s129
      %p143 = scmp.eq.s32.totalorder %s27, 1
      %p144 = por %p142, %p143
      %p146 = scmp.ne.s32.totalorder %s129, %s145
      %p147 = scmp.eq.s32.totalorder %s27, 0
      %p148 = por %p146, %p147
      %p149 = scmp.le.s32.totalorder 1, %s21
      %p150 = scmp.lt.s32.totalorder %s21, 3
      %p151 = pnand %p149, %p150
      %p152 = pneg %p151
      // Predicated region
      $region9: #{tpu_custom_call.1} parent=5 // pred_check
        _
      $region10: #{tpu_custom_call.1} parent=5 // pred_check_branch
        %154 = sbr.rel (%p151) target = $region12
      $region11: #{tpu_custom_call.1} parent=5 // pred_region
        %s155 = ssub.s32 %s21, 1
        // Predicated region
        $region13: #{tpu_custom_call.1} parent=11 // pred_check
          %p156 = pneg %p68
        $region14: #{tpu_custom_call.1} parent=11 // pred_check_branch
          %158 = sbr.rel (%p156) target = $region16
        $region15: #{tpu_custom_call.1} parent=11 // pred_region
          %s160 = ssub.s32 1024, 1024
          %161 = vsyncadd [#allocation6], %s160
          %s162 = sshll.u32 [#allocation5], 4
          %s163 = int_to_ptr.vmem [resolvable:$true] %s162
          %168 = dma.hbm_to_vmem [thread:$0]  %s1, 1024, %s163, [#allocation6], 64, 64, 4
        $region16: #{tpu_custom_call.1} parent=11 // pred_fallthru
          _
        // Predicated region
        $region17: #{tpu_custom_call.1} parent=11 // pred_check
          %p169 = pneg %p89
        $region18: #{tpu_custom_call.1} parent=11 // pred_check_branch
          %171 = sbr.rel (%p169) target = $region20
        $region19: #{tpu_custom_call.1} parent=11 // pred_region
          %s173 = ssub.s32 1024, 1024
          %174 = vsyncadd [#allocation6], %s173
          %s175 = sshll.u32 [#allocation7], 4
          %s176 = int_to_ptr.vmem [resolvable:$true] %s175
          %181 = dma.hbm_to_vmem [thread:$0]  %s2, 1024, %s176, [#allocation6], 64, 64, 4
        $region20: #{tpu_custom_call.1} parent=11 // pred_fallthru
          _
      $region12: #{tpu_custom_call.1} parent=5 // pred_fallthru
        _
      %p182 = scmp.lt.s32.totalorder %s21, 2
      // Predicated region
      $region21: #{tpu_custom_call.1} parent=5 // pred_check
        %p183 = pneg %p182
      $region22: #{tpu_custom_call.1} parent=5 // pred_check_branch
        %185 = sbr.rel (%p183) target = $region24
      $region23: #{tpu_custom_call.1} parent=5 // pred_region
        // Predicated region
        $region25: #{tpu_custom_call.1} parent=23 // pred_check
          %p186 = pneg %p41
        $region26: #{tpu_custom_call.1} parent=23 // pred_check_branch
          %188 = sbr.rel (%p186) target = $region28
        $region27: #{tpu_custom_call.1} parent=23 // pred_region
          %s189 = sand.u32 %s31, 1
          %s190 = scalar_lea.sflag [#allocation3], %s189
          %s191 = sand.u32 %s31, 1
          %s192 = smul.addr %s191, 64
          %s193 = scalar_lea.vmem [#allocation2], %s192
          %s194 = smul.u32 16, %s21
          %s196 = ssub.s32 1024, 1024
          %197 = vsyncadd %s190, %s196
          %s198 = smul.addr %s194, 64
          %s199 = scalar_lea.hbm %s0, %s198
          %s200 = sshll.u32 %s193, 4
          %s201 = int_to_ptr.vmem [resolvable:$true] %s200
          %206 = dma.hbm_to_vmem [thread:$0]  %s199, 1024, %s201, %s190, 64, 64, 4
        $region28: #{tpu_custom_call.1} parent=23 // pred_fallthru
          _
      $region24: #{tpu_custom_call.1} parent=5 // pred_fallthru
        _
      %p207 = scmp.le.s32.totalorder 1, %s21
      %p208 = scmp.lt.s32.totalorder %s21, 3
      %p209 = pnand %p207, %p208
      %p210 = pneg %p209
      // Predicated region
      $region29: #{tpu_custom_call.1} parent=5 // pred_check
        _
      $region30: #{tpu_custom_call.1} parent=5 // pred_check_branch
        %212 = sbr.rel (%p209) target = $region32
      $region31: #{tpu_custom_call.1} parent=5 // pred_region
        %s213 = ssub.s32 %s21, 1
        %s214 = sand.u32 %s34, 1
        %s215 = scalar_lea.sflag [#allocation3], %s214
        %s216 = sand.u32 %s34, 1
        %s217 = smul.addr %s216, 64
        %s218 = scalar_lea.vmem [#allocation2], %s217
        // Predicated region
        $region33: #{tpu_custom_call.1} parent=31 // pred_check
          %p219 = pneg %p47
        $region34: #{tpu_custom_call.1} parent=31 // pred_check_branch
          %221 = sbr.rel (%p219) target = $region36
        $region35: #{tpu_custom_call.1} parent=31 // pred_region
          %222 = dma.done %s215, 1024
        $region36: #{tpu_custom_call.1} parent=31 // pred_fallthru
          _
        // Predicated region
        $region37: #{tpu_custom_call.1} parent=31 // pred_check
          %p223 = pneg %p68
        $region38: #{tpu_custom_call.1} parent=31 // pred_check_branch
          %225 = sbr.rel (%p223) target = $region40
        $region39: #{tpu_custom_call.1} parent=31 // pred_region
          %226 = dma.done [#allocation6], 1024
        $region40: #{tpu_custom_call.1} parent=31 // pred_fallthru
          _
        // Predicated region
        $region41: #{tpu_custom_call.1} parent=31 // pred_check
          %p227 = pneg %p89
        $region42: #{tpu_custom_call.1} parent=31 // pred_check_branch
          %229 = sbr.rel (%p227) target = $region44
        $region43: #{tpu_custom_call.1} parent=31 // pred_region
          %230 = dma.done [#allocation6], 1024
        $region44: #{tpu_custom_call.1} parent=31 // pred_fallthru
          _
        %s231 = sand.u32 %s34, 1
        %s232 = scalar_lea.sflag [#allocation3], %s231
        %s233 = sand.u32 %s34, 1
        %s234 = smul.addr %s233, 64
        %s235 = scalar_lea.vmem [#allocation2], %s234
        %p236 = pneg %p47
        %p237 = pneg %p44
        %p238 = pneg %p68
        %p239 = pneg %p65
        %p240 = pneg %p89
        %p241 = pneg %p86
        %p242 = pneg %p115
        %p243 = pneg %p112
        %s244 = sand.u32 %s102, 1
        %s245 = scalar_lea.sflag [#allocation4], %s244
        %s246 = sand.u32 %s102, 1
        %s247 = smul.addr %s246, 64
        %s248 = scalar_lea.vmem [#allocation8], %s247
        %p249 = pneg %p141
        %p250 = pneg %p138
        %s251 = sand.u32 %s128, 1
        %s252 = scalar_lea.sflag [#allocation10], %s251
        %s253 = sand.u32 %s128, 1
        %s254 = smul.addr %s253, 128
        %s255 = scalar_lea.vmem [#allocation9], %s254
        %s256 = smul.u32 16, %s26
        %s257 = smul.u32 16, %s26
        %s258 = smul.u32 16, %s26
        %v260 = vld [vmem:[%s218] sm:$0xf]
        %v261 = vld [vmem:[%s218 + $0x4] sm:$0xf]
        %v262 = vld [vmem:[%s218 + $0x8] sm:$0xf]
        %v263 = vld [vmem:[%s218 + $0xc] sm:$0xf]
        %v264 = vld [vmem:[%s218 + $0x10] sm:$0xf]
        %v265 = vld [vmem:[%s218 + $0x14] sm:$0xf]
        %v266 = vld [vmem:[%s218 + $0x18] sm:$0xf]
        %v267 = vld [vmem:[%s218 + $0x1c] sm:$0xf]
        %v268 = vld [vmem:[%s218 + $0x20] sm:$0xf]
        %v269 = vld [vmem:[%s218 + $0x24] sm:$0xf]
        %v270 = vld [vmem:[%s218 + $0x28] sm:$0xf]
        %v271 = vld [vmem:[%s218 + $0x2c] sm:$0xf]
        %v272 = vld [vmem:[%s218 + $0x30] sm:$0xf]
        %v273 = vld [vmem:[%s218 + $0x34] sm:$0xf]
        %v274 = vld [vmem:[%s218 + $0x38] sm:$0xf]
        %v275 = vld [vmem:[%s218 + $0x3c] sm:$0xf]
        %v276 = vld [vmem:[#allocation5] sm:$0xf]
        %v277 = vld [vmem:[#allocation5 + $0x4] sm:$0xf]
        %v278 = vld [vmem:[#allocation5 + $0x8] sm:$0xf]
        %v279 = vld [vmem:[#allocation5 + $0xc] sm:$0xf]
        %v280 = vld [vmem:[#allocation5 + $0x10] sm:$0xf]
        %v281 = vld [vmem:[#allocation5 + $0x14] sm:$0xf]
        %v282 = vld [vmem:[#allocation5 + $0x18] sm:$0xf]
        %v283 = vld [vmem:[#allocation5 + $0x1c] sm:$0xf]
        %v284 = vld [vmem:[#allocation5 + $0x20] sm:$0xf]
        %v285 = vld [vmem:[#allocation5 + $0x24] sm:$0xf]
        %v286 = vld [vmem:[#allocation5 + $0x28] sm:$0xf]
        %v287 = vld [vmem:[#allocation5 + $0x2c] sm:$0xf]
        %v288 = vld [vmem:[#allocation5 + $0x30] sm:$0xf]
        %v289 = vld [vmem:[#allocation5 + $0x34] sm:$0xf]
        %v290 = vld [vmem:[#allocation5 + $0x38] sm:$0xf]
        %v291 = vld [vmem:[#allocation5 + $0x3c] sm:$0xf]
        %v308 = vunpack.c.l.b16 %v260
        %v309 = vunpack.c.l.b16 %v261
        %v310 = vunpack.c.l.b16 %v262
        %v311 = vunpack.c.l.b16 %v263
        %v312 = vunpack.c.l.b16 %v264
        %v313 = vunpack.c.l.b16 %v265
        %v314 = vunpack.c.l.b16 %v266
        %v315 = vunpack.c.l.b16 %v267
        %v316 = vunpack.c.l.b16 %v268
        %v317 = vunpack.c.l.b16 %v269
        %v318 = vunpack.c.l.b16 %v270
        %v319 = vunpack.c.l.b16 %v271
        %v320 = vunpack.c.l.b16 %v272
        %v321 = vunpack.c.l.b16 %v273
        %v322 = vunpack.c.l.b16 %v274
        %v323 = vunpack.c.l.b16 %v275
        %v324 = vpack.c.b16 %v309, %v308
        %v325 = vpack.c.b16 %v311, %v310
        %v326 = vpack.c.b16 %v313, %v312
        %v327 = vpack.c.b16 %v315, %v314
        %v328 = vpack.c.b16 %v317, %v316
        %v329 = vpack.c.b16 %v319, %v318
        %v330 = vpack.c.b16 %v321, %v320
        %v331 = vpack.c.b16 %v323, %v322
        %v356 = vunpack.c.l.b16 %v276
        %v357 = vunpack.c.l.b16 %v277
        %v358 = vunpack.c.l.b16 %v278
        %v359 = vunpack.c.l.b16 %v279
        %v360 = vunpack.c.l.b16 %v280
        %v361 = vunpack.c.l.b16 %v281
        %v362 = vunpack.c.l.b16 %v282
        %v363 = vunpack.c.l.b16 %v283
        %v364 = vunpack.c.l.b16 %v284
        %v365 = vunpack.c.l.b16 %v285
        %v366 = vunpack.c.l.b16 %v286
        %v367 = vunpack.c.l.b16 %v287
        %v368 = vunpack.c.l.b16 %v288
        %v369 = vunpack.c.l.b16 %v289
        %v370 = vunpack.c.l.b16 %v290
        %v371 = vunpack.c.l.b16 %v291
        %v372 = vpack.c.b16 %v357, %v356
        %v373 = vpack.c.b16 %v359, %v358
        %v374 = vpack.c.b16 %v361, %v360
        %v375 = vpack.c.b16 %v363, %v362
        %v376 = vpack.c.b16 %v365, %v364
        %v377 = vpack.c.b16 %v367, %v366
        %v378 = vpack.c.b16 %v369, %v368
        %v379 = vpack.c.b16 %v371, %v370
        %388 = vmatprep.subr.bf16.mxu0 0
        %389 = vmatpush1.bf16.msra.mxu0 %v379
        %390 = vmatprep.subr.bf16.mxu0 0
        %391 = vmatpush1.bf16.msra.mxu0 %v378
        %392 = vmatprep.subr.bf16.mxu0 0
        %393 = vmatpush1.bf16.msra.mxu0 %v377
        %394 = vmatprep.subr.bf16.mxu0 0
        %395 = vmatpush1.bf16.msra.mxu0 %v376
        %396 = vmatprep.subr.bf16.mxu0 0
        %397 = vmatpush1.bf16.msra.mxu0 %v375
        %398 = vmatprep.subr.bf16.mxu0 0
        %399 = vmatpush1.bf16.msra.mxu0 %v374
        %400 = vmatprep.subr.bf16.mxu0 0
        %401 = vmatpush1.bf16.msra.mxu0 %v373
        %402 = vmatprep.subr.bf16.mxu0 0
        %403 = vmatpush1.bf16.msra.mxu0 %v372
        %404 = vmatprep.subr.bf16.mxu0 0
        %405 = vmatpush2.bf16.msra.mxu0 0
        %406 = vmatprep.subr.bf16.mxu0 0
        %407 = vmatpush2.bf16.msra.mxu0 0
        %408 = vmatprep.subr.bf16.mxu0 0
        %409 = vmatpush2.bf16.msra.mxu0 0
        %410 = vmatprep.subr.bf16.mxu0 0
        %411 = vmatpush2.bf16.msra.mxu0 0
        %412 = vmatprep.subr.bf16.mxu0 0
        %413 = vmatpush2.bf16.msra.mxu0 0
        %414 = vmatprep.subr.bf16.mxu0 0
        %415 = vmatpush2.bf16.msra.mxu0 0
        %416 = vmatprep.subr.bf16.mxu0 0
        %417 = vmatpush2.bf16.msra.mxu0 0
        %418 = vmatprep.subr.bf16.mxu0 0
        %419 = vmatpush2.bf16.msra.mxu0 0
        %420 = vmatprep.mubr.bf16.mxu0 0
        %421 = vmatmul.mubr.bf16.gmra.mxu0 %v324
        %v422 = vpop.f32.mrf.mxu0
        %v423 = vadd.f32 0.0, %v422
        %v424 = vpop.f32.mrf.mxu0
        %v425 = vpop.f32.mrf.mxu0
        %v426 = vadd.f32 0.0, %v425
        %v427 = vpop.f32.mrf.mxu0
        %428 = vmatprep.mubr.bf16.mxu0 0
        %429 = vmatmul.mubr.bf16.gmra.mxu0 %v325
        %v430 = vpop.f32.mrf.mxu0
        %v431 = vadd.f32 0.0, %v430
        %v432 = vpop.f32.mrf.mxu0
        %v433 = vpop.f32.mrf.mxu0
        %v434 = vadd.f32 0.0, %v433
        %v435 = vpop.f32.mrf.mxu0
        %436 = vmatprep.mubr.bf16.mxu0 0
        %437 = vmatmul.mubr.bf16.gmra.mxu0 %v326
        %v438 = vpop.f32.mrf.mxu0
        %v439 = vadd.f32 0.0, %v438
        %v440 = vpop.f32.mrf.mxu0
        %v441 = vpop.f32.mrf.mxu0
        %v442 = vadd.f32 0.0, %v441
        %v443 = vpop.f32.mrf.mxu0
        %444 = vmatprep.mubr.bf16.mxu0 0
        %445 = vmatmul.mubr.bf16.gmra.mxu0 %v327
        %v446 = vpop.f32.mrf.mxu0
        %v447 = vadd.f32 0.0, %v446
        %v448 = vpop.f32.mrf.mxu0
        %v449 = vpop.f32.mrf.mxu0
        %v450 = vadd.f32 0.0, %v449
        %v451 = vpop.f32.mrf.mxu0
        %452 = vmatprep.mubr.bf16.mxu0 0
        %453 = vmatmul.mubr.bf16.gmra.mxu0 %v328
        %v454 = vpop.f32.mrf.mxu0
        %v455 = vadd.f32 0.0, %v454
        %v456 = vpop.f32.mrf.mxu0
        %v457 = vpop.f32.mrf.mxu0
        %v458 = vadd.f32 0.0, %v457
        %v459 = vpop.f32.mrf.mxu0
        %460 = vmatprep.mubr.bf16.mxu0 0
        %461 = vmatmul.mubr.bf16.gmra.mxu0 %v329
        %v462 = vpop.f32.mrf.mxu0
        %v463 = vadd.f32 0.0, %v462
        %v464 = vpop.f32.mrf.mxu0
        %v465 = vpop.f32.mrf.mxu0
        %v466 = vadd.f32 0.0, %v465
        %v467 = vpop.f32.mrf.mxu0
        %468 = vmatprep.mubr.bf16.mxu0 0
        %469 = vmatmul.mubr.bf16.gmra.mxu0 %v330
        %v470 = vpop.f32.mrf.mxu0
        %v471 = vadd.f32 0.0, %v470
        %v472 = vpop.f32.mrf.mxu0
        %v473 = vpop.f32.mrf.mxu0
        %v474 = vadd.f32 0.0, %v473
        %v475 = vpop.f32.mrf.mxu0
        %476 = vmatprep.mubr.bf16.mxu0 0
        %477 = vmatmul.mubr.bf16.gmra.mxu0 %v331
        %v478 = vpop.f32.mrf.mxu0
        %v479 = vadd.f32 0.0, %v478
        %v480 = vpop.f32.mrf.mxu0
        %v481 = vpop.f32.mrf.mxu0
        %v482 = vadd.f32 0.0, %v481
        %v483 = vpop.f32.mrf.mxu0
        %484 = vdwg.mxu0
        %v485 = vpack.c.bf16 %v426, %v423
        %v486 = vpack.c.bf16 %v434, %v431
        %v487 = vpack.c.bf16 %v442, %v439
        %v488 = vpack.c.bf16 %v450, %v447
        %v489 = vpack.c.bf16 %v458, %v455
        %v490 = vpack.c.bf16 %v466, %v463
        %v491 = vpack.c.bf16 %v474, %v471
        %v492 = vpack.c.bf16 %v482, %v479
        %v493 = vld [vmem:[#allocation7] sm:$0xf]
        %v494 = vld [vmem:[#allocation7 + $0x4] sm:$0xf]
        %v495 = vld [vmem:[#allocation7 + $0x8] sm:$0xf]
        %v496 = vld [vmem:[#allocation7 + $0xc] sm:$0xf]
        %v497 = vld [vmem:[#allocation7 + $0x10] sm:$0xf]
        %v498 = vld [vmem:[#allocation7 + $0x14] sm:$0xf]
        %v499 = vld [vmem:[#allocation7 + $0x18] sm:$0xf]
        %v500 = vld [vmem:[#allocation7 + $0x1c] sm:$0xf]
        %v501 = vld [vmem:[#allocation7 + $0x20] sm:$0xf]
        %v502 = vld [vmem:[#allocation7 + $0x24] sm:$0xf]
        %v503 = vld [vmem:[#allocation7 + $0x28] sm:$0xf]
        %v504 = vld [vmem:[#allocation7 + $0x2c] sm:$0xf]
        %v505 = vld [vmem:[#allocation7 + $0x30] sm:$0xf]
        %v506 = vld [vmem:[#allocation7 + $0x34] sm:$0xf]
        %v507 = vld [vmem:[#allocation7 + $0x38] sm:$0xf]
        %v508 = vld [vmem:[#allocation7 + $0x3c] sm:$0xf]
        %v525 = vunpack.c.l.b16 %v493
        %v526 = vunpack.c.l.b16 %v494
        %v527 = vunpack.c.l.b16 %v495
        %v528 = vunpack.c.l.b16 %v496
        %v529 = vunpack.c.l.b16 %v497
        %v530 = vunpack.c.l.b16 %v498
        %v531 = vunpack.c.l.b16 %v499
        %v532 = vunpack.c.l.b16 %v500
        %v533 = vunpack.c.l.b16 %v501
        %v534 = vunpack.c.l.b16 %v502
        %v535 = vunpack.c.l.b16 %v503
        %v536 = vunpack.c.l.b16 %v504
        %v537 = vunpack.c.l.b16 %v505
        %v538 = vunpack.c.l.b16 %v506
        %v539 = vunpack.c.l.b16 %v507
        %v540 = vunpack.c.l.b16 %v508
        %v541 = vpack.c.b16 %v526, %v525
        %v542 = vpack.c.b16 %v528, %v527
        %v543 = vpack.c.b16 %v530, %v529
        %v544 = vpack.c.b16 %v532, %v531
        %v545 = vpack.c.b16 %v534, %v533
        %v546 = vpack.c.b16 %v536, %v535
        %v547 = vpack.c.b16 %v538, %v537
        %v548 = vpack.c.b16 %v540, %v539
        %557 = vmatprep.subr.bf16.mxu0 0
        %558 = vmatpush1.bf16.msra.mxu0 %v548
        %559 = vmatprep.subr.bf16.mxu0 0
        %560 = vmatpush1.bf16.msra.mxu0 %v547
        %561 = vmatprep.subr.bf16.mxu0 0
        %562 = vmatpush1.bf16.msra.mxu0 %v546
        %563 = vmatprep.subr.bf16.mxu0 0
        %564 = vmatpush1.bf16.msra.mxu0 %v545
        %565 = vmatprep.subr.bf16.mxu0 0
        %566 = vmatpush1.bf16.msra.mxu0 %v544
        %567 = vmatprep.subr.bf16.mxu0 0
        %568 = vmatpush1.bf16.msra.mxu0 %v543
        %569 = vmatprep.subr.bf16.mxu0 0
        %570 = vmatpush1.bf16.msra.mxu0 %v542
        %571 = vmatprep.subr.bf16.mxu0 0
        %572 = vmatpush1.bf16.msra.mxu0 %v541
        %573 = vmatprep.subr.bf16.mxu0 0
        %574 = vmatpush2.bf16.msra.mxu0 0
        %575 = vmatprep.subr.bf16.mxu0 0
        %576 = vmatpush2.bf16.msra.mxu0 0
        %577 = vmatprep.subr.bf16.mxu0 0
        %578 = vmatpush2.bf16.msra.mxu0 0
        %579 = vmatprep.subr.bf16.mxu0 0
        %580 = vmatpush2.bf16.msra.mxu0 0
        %581 = vmatprep.subr.bf16.mxu0 0
        %582 = vmatpush2.bf16.msra.mxu0 0
        %583 = vmatprep.subr.bf16.mxu0 0
        %584 = vmatpush2.bf16.msra.mxu0 0
        %585 = vmatprep.subr.bf16.mxu0 0
        %586 = vmatpush2.bf16.msra.mxu0 0
        %587 = vmatprep.subr.bf16.mxu0 0
        %588 = vmatpush2.bf16.msra.mxu0 0
        %589 = vmatprep.mubr.bf16.mxu0 0
        %590 = vmatmul.mubr.bf16.gmra.mxu0 %v485
        %v591 = vpop.f32.mrf.mxu0
        %v592 = vadd.f32 0.0, %v591
        %v593 = vpop.f32.mrf.mxu0
        %v594 = vpop.f32.mrf.mxu0
        %v595 = vadd.f32 0.0, %v594
        %v596 = vpop.f32.mrf.mxu0
        %597 = vmatprep.mubr.bf16.mxu0 0
        %598 = vmatmul.mubr.bf16.gmra.mxu0 %v486
        %v599 = vpop.f32.mrf.mxu0
        %v600 = vadd.f32 0.0, %v599
        %v601 = vpop.f32.mrf.mxu0
        %v602 = vpop.f32.mrf.mxu0
        %v603 = vadd.f32 0.0, %v602
        %v604 = vpop.f32.mrf.mxu0
        %605 = vmatprep.mubr.bf16.mxu0 0
        %606 = vmatmul.mubr.bf16.gmra.mxu0 %v487
        %v607 = vpop.f32.mrf.mxu0
        %v608 = vadd.f32 0.0, %v607
        %v609 = vpop.f32.mrf.mxu0
        %v610 = vpop.f32.mrf.mxu0
        %v611 = vadd.f32 0.0, %v610
        %v612 = vpop.f32.mrf.mxu0
        %613 = vmatprep.mubr.bf16.mxu0 0
        %614 = vmatmul.mubr.bf16.gmra.mxu0 %v488
        %v615 = vpop.f32.mrf.mxu0
        %v616 = vadd.f32 0.0, %v615
        %v617 = vpop.f32.mrf.mxu0
        %v618 = vpop.f32.mrf.mxu0
        %v619 = vadd.f32 0.0, %v618
        %v620 = vpop.f32.mrf.mxu0
        %621 = vmatprep.mubr.bf16.mxu0 0
        %622 = vmatmul.mubr.bf16.gmra.mxu0 %v489
        %v623 = vpop.f32.mrf.mxu0
        %v624 = vadd.f32 0.0, %v623
        %v625 = vpop.f32.mrf.mxu0
        %v626 = vpop.f32.mrf.mxu0
        %v627 = vadd.f32 0.0, %v626
        %v628 = vpop.f32.mrf.mxu0
        %629 = vmatprep.mubr.bf16.mxu0 0
        %630 = vmatmul.mubr.bf16.gmra.mxu0 %v490
        %v631 = vpop.f32.mrf.mxu0
        %v632 = vadd.f32 0.0, %v631
        %v633 = vpop.f32.mrf.mxu0
        %v634 = vpop.f32.mrf.mxu0
        %v635 = vadd.f32 0.0, %v634
        %v636 = vpop.f32.mrf.mxu0
        %637 = vmatprep.mubr.bf16.mxu0 0
        %638 = vmatmul.mubr.bf16.gmra.mxu0 %v491
        %v639 = vpop.f32.mrf.mxu0
        %v640 = vadd.f32 0.0, %v639
        %v641 = vpop.f32.mrf.mxu0
        %v642 = vpop.f32.mrf.mxu0
        %v643 = vadd.f32 0.0, %v642
        %v644 = vpop.f32.mrf.mxu0
        %645 = vmatprep.mubr.bf16.mxu0 0
        %646 = vmatmul.mubr.bf16.gmra.mxu0 %v492
        %v647 = vpop.f32.mrf.mxu0
        %v648 = vadd.f32 0.0, %v647
        %v649 = vpop.f32.mrf.mxu0
        %v650 = vpop.f32.mrf.mxu0
        %v651 = vadd.f32 0.0, %v650
        %v652 = vpop.f32.mrf.mxu0
        %653 = vdwg.mxu0
        %v662 = vunpack.c.l.b16 %v485
        %v663 = vunpack.c.h.b16 %v485
        %v664 = vunpack.c.l.b16 %v486
        %v665 = vunpack.c.h.b16 %v486
        %v666 = vunpack.c.l.b16 %v487
        %v667 = vunpack.c.h.b16 %v487
        %v668 = vunpack.c.l.b16 %v488
        %v669 = vunpack.c.h.b16 %v488
        %v670 = vunpack.c.l.b16 %v489
        %v671 = vunpack.c.h.b16 %v489
        %v672 = vunpack.c.l.b16 %v490
        %v673 = vunpack.c.h.b16 %v490
        %v674 = vunpack.c.l.b16 %v491
        %v675 = vunpack.c.h.b16 %v491
        %v676 = vunpack.c.l.b16 %v492
        %v677 = vunpack.c.h.b16 %v492
        %v678 = vpack.c.b16 %v662, %v662
        %v679 = vpack.c.b16 %v663, %v663
        %v680 = vpack.c.b16 %v664, %v664
        %v681 = vpack.c.b16 %v665, %v665
        %v682 = vpack.c.b16 %v666, %v666
        %v683 = vpack.c.b16 %v667, %v667
        %v684 = vpack.c.b16 %v668, %v668
        %v685 = vpack.c.b16 %v669, %v669
        %v686 = vpack.c.b16 %v670, %v670
        %v687 = vpack.c.b16 %v671, %v671
        %v688 = vpack.c.b16 %v672, %v672
        %v689 = vpack.c.b16 %v673, %v673
        %v690 = vpack.c.b16 %v674, %v674
        %v691 = vpack.c.b16 %v675, %v675
        %v692 = vpack.c.b16 %v676, %v676
        %v693 = vpack.c.b16 %v677, %v677
        %710 = vst [vmem:[%s248] sm:$0xf] %v678
        %711 = vst [vmem:[%s248 + $0x4] sm:$0xf] %v679
        %712 = vst [vmem:[%s248 + $0x8] sm:$0xf] %v680
        %713 = vst [vmem:[%s248 + $0xc] sm:$0xf] %v681
        %714 = vst [vmem:[%s248 + $0x10] sm:$0xf] %v682
        %715 = vst [vmem:[%s248 + $0x14] sm:$0xf] %v683
        %716 = vst [vmem:[%s248 + $0x18] sm:$0xf] %v684
        %717 = vst [vmem:[%s248 + $0x1c] sm:$0xf] %v685
        %718 = vst [vmem:[%s248 + $0x20] sm:$0xf] %v686
        %719 = vst [vmem:[%s248 + $0x24] sm:$0xf] %v687
        %720 = vst [vmem:[%s248 + $0x28] sm:$0xf] %v688
        %721 = vst [vmem:[%s248 + $0x2c] sm:$0xf] %v689
        %722 = vst [vmem:[%s248 + $0x30] sm:$0xf] %v690
        %723 = vst [vmem:[%s248 + $0x34] sm:$0xf] %v691
        %724 = vst [vmem:[%s248 + $0x38] sm:$0xf] %v692
        %725 = vst [vmem:[%s248 + $0x3c] sm:$0xf] %v693
        %726 = vst [vmem:[%s255] sm:$0xff] %v592
        %727 = vst [vmem:[%s255 + $0x8] sm:$0xff] %v595
        %728 = vst [vmem:[%s255 + $0x10] sm:$0xff] %v600
        %729 = vst [vmem:[%s255 + $0x18] sm:$0xff] %v603
        %730 = vst [vmem:[%s255 + $0x20] sm:$0xff] %v608
        %731 = vst [vmem:[%s255 + $0x28] sm:$0xff] %v611
        %732 = vst [vmem:[%s255 + $0x30] sm:$0xff] %v616
        %733 = vst [vmem:[%s255 + $0x38] sm:$0xff] %v619
        %734 = vst [vmem:[%s255 + $0x40] sm:$0xff] %v624
        %735 = vst [vmem:[%s255 + $0x48] sm:$0xff] %v627
        %736 = vst [vmem:[%s255 + $0x50] sm:$0xff] %v632
        %737 = vst [vmem:[%s255 + $0x58] sm:$0xff] %v635
        %738 = vst [vmem:[%s255 + $0x60] sm:$0xff] %v640
        %739 = vst [vmem:[%s255 + $0x68] sm:$0xff] %v643
        %740 = vst [vmem:[%s255 + $0x70] sm:$0xff] %v648
        %741 = vst [vmem:[%s255 + $0x78] sm:$0xff] %v651
        %s742 = sand.u32 %s102, 1
        %s743 = scalar_lea.sflag [#allocation4], %s742
        %s744 = sand.u32 %s102, 1
        %s745 = smul.addr %s744, 64
        %s746 = scalar_lea.vmem [#allocation8], %s745
        %s747 = sand.u32 %s128, 1
        %s748 = scalar_lea.sflag [#allocation10], %s747
        %s749 = sand.u32 %s128, 1
        %s750 = smul.addr %s749, 128
        %s751 = scalar_lea.vmem [#allocation9], %s750
        // Predicated region
        $region45: #{tpu_custom_call.1} parent=31 // pred_check
          %p752 = pneg %p112
        $region46: #{tpu_custom_call.1} parent=31 // pred_check_branch
          %754 = sbr.rel (%p752) target = $region48
        $region47: #{tpu_custom_call.1} parent=31 // pred_region
          %s755 = smul.u32 16, %s26
          %s757 = ssub.s32 1024, 1024
          %758 = vsyncadd %s743, %s757
          %s759 = smul.addr %s755, 64
          %s760 = scalar_lea.hbm %s3, %s759
          %s761 = sshll.u32 %s746, 4
          %s762 = int_to_ptr.vmem [resolvable:$true] %s761
          %767 = dma.vmem_to_hbm [thread:$0]  %s762, 1024, %s760, %s743, 64, 64, 4
        $region48: #{tpu_custom_call.1} parent=31 // pred_fallthru
          _
        // Predicated region
        $region49: #{tpu_custom_call.1} parent=31 // pred_check
          %p768 = pneg %p138
        $region50: #{tpu_custom_call.1} parent=31 // pred_check_branch
          %770 = sbr.rel (%p768) target = $region52
        $region51: #{tpu_custom_call.1} parent=31 // pred_region
          %s771 = smul.u32 16, %s26
          %s773 = ssub.s32 2048, 2048
          %774 = vsyncadd %s748, %s773
          %s775 = smul.addr %s771, 128
          %s776 = scalar_lea.hbm %s4, %s775
          %s777 = sshll.u32 %s751, 4
          %s778 = int_to_ptr.vmem [resolvable:$true] %s777
          %783 = dma.vmem_to_hbm [thread:$0]  %s778, 2048, %s776, %s748, 128, 128, 8
        $region52: #{tpu_custom_call.1} parent=31 // pred_fallthru
          _
      $region32: #{tpu_custom_call.1} parent=5 // pred_fallthru
        _
      %p784 = scmp.le.s32.totalorder 2, %s21
      // Predicated region
      $region53: #{tpu_custom_call.1} parent=5 // pred_check
        %p785 = pneg %p784
      $region54: #{tpu_custom_call.1} parent=5 // pred_check_branch
        %787 = sbr.rel (%p785) target = $region56
      $region55: #{tpu_custom_call.1} parent=5 // pred_region
        %s788 = ssub.s32 %s21, 2
        // Predicated region
        $region57: #{tpu_custom_call.1} parent=55 // pred_check
          %p789 = pneg %p118
        $region58: #{tpu_custom_call.1} parent=55 // pred_check_branch
          %791 = sbr.rel (%p789) target = $region60
        $region59: #{tpu_custom_call.1} parent=55 // pred_region
          %s792 = sand.u32 %s103, 1
          %s793 = scalar_lea.sflag [#allocation4], %s792
          %s794 = sand.u32 %s103, 1
          %s795 = smul.addr %s794, 64
          %s796 = scalar_lea.vmem [#allocation8], %s795
          %797 = dma.done %s793, 1024
        $region60: #{tpu_custom_call.1} parent=55 // pred_fallthru
          _
        // Predicated region
        $region61: #{tpu_custom_call.1} parent=55 // pred_check
          %p798 = pneg %p144
        $region62: #{tpu_custom_call.1} parent=55 // pred_check_branch
          %800 = sbr.rel (%p798) target = $region64
        $region63: #{tpu_custom_call.1} parent=55 // pred_region
          %s801 = sand.u32 %s129, 1
          %s802 = scalar_lea.sflag [#allocation10], %s801
          %s803 = sand.u32 %s129, 1
          %s804 = smul.addr %s803, 128
          %s805 = scalar_lea.vmem [#allocation9], %s804
          %806 = dma.done %s802, 2048
        $region64: #{tpu_custom_call.1} parent=55 // pred_fallthru
          _
      $region56: #{tpu_custom_call.1} parent=5 // pred_fallthru
        _
    $region6: #{tpu_custom_call.1} parent=1 // loop_footer
      %s25 = sadd.s32 1, %s21
    $region7: #{tpu_custom_call.1} parent=1 // loop_footer_branch
      %20 = sbr.rel target = $region3
    $region8: #{tpu_custom_call.1} parent=1 // loop_exit
      _
    %807 = vsyncpa [#allocation3], 1
    %s808 = scalar_lea.sflag [#allocation3], 1
    %809 = vsyncpa %s808, 1
    %810 = vsyncpa [#allocation6], 1
    %811 = vsyncpa [#allocation4], 1
    %s812 = scalar_lea.sflag [#allocation4], 1
    %813 = vsyncpa %s812, 1
    %814 = vsyncpa [#allocation10], 1
    %s815 = scalar_lea.sflag [#allocation10], 1
    %816 = vsyncpa %s815, 1

</llo_original>
